<compile_context>
chip_gen: v5e
topology: v5e:2x2
jax: 0.10.0
libtpu: 0.0.40
codegen_flags: <defaults>
</compile_context>

<pallas_src>
import functools

import jax
import jax.numpy as jnp
from jax.experimental import pallas as pl
from jax.experimental.pallas import tpu as pltpu

EPS = 1e-5
F32 = jnp.float32
BF16 = jnp.bfloat16


# --------------------------------- kernels ---------------------------------

def _trans_stats_kernel(x_ref, xt_ref, st_ref):
    """NCHW -> NHWC pixel-tile transpose fused with BN1 batch-stat partials."""
    xt = x_ref[0].T                                                  # (TP0, Cin) f32
    xt_ref[0] = xt
    st_ref[...] = jnp.concatenate(
        [jnp.sum(xt, axis=0, keepdims=True),
         jnp.sum(xt * xt, axis=0, keepdims=True)], axis=0)[None, None]


def _stage1_kernel(x_ref, s_ref, b_ref, w_ref, bb_ref, h_ref, st_ref):
    """BN1(folded) -> ReLU -> 1x1 conv.  h1 stored bf16; stats taken from the f32 result."""
    a = jnp.maximum(x_ref[0] * s_ref[...] + b_ref[...], 0.0)        # (TP, Cin) f32
    h = jnp.dot(a.astype(BF16), w_ref[...],
                preferred_element_type=F32) + bb_ref[...]           # (TP, Cb) f32
    h_ref[0] = h.astype(h_ref.dtype)
    st_ref[...] = jnp.concatenate(
        [jnp.sum(h, axis=0, keepdims=True),
         jnp.sum(h * h, axis=0, keepdims=True)], axis=0)[None, None]


def _stage2_kernel(hm_ref, ht_ref, hb_ref, s_ref, b_ref, w2_ref, bb_ref,
                   h2_ref, st_ref, *, H, W, TH):
    """BN2 -> ReLU -> 3x3 conv (pad=1) on a TH-row block with a 1-row halo.

    The 9 taps are built in bf16 as static row/column shifts of the (TH+2, W, Cb)
    window (zero column for the left/right 'same' padding, a (TH,1,1) row mask for
    the global top/bottom rows since halo reads are clamped) and concatenated along
    channels, so the whole conv is ONE (TH*W, 9*Cb) x (9*Cb, Cb) MXU matmul."""
    Cb = hm_ref.shape[-1]
    P = TH * W
    hblk = pl.program_id(1)

    win = jnp.concatenate([ht_ref[0].reshape(1, W, Cb),
                           hm_ref[0].reshape(TH, W, Cb),
                           hb_ref[0].reshape(1, W, Cb)], axis=0)      # (TH+2, W, Cb) bf16
    a = jnp.maximum(win.astype(F32) * s_ref[...] + b_ref[...], 0.0)   # BN/ReLU in f32
    a = a.astype(BF16)                                                # taps/shifts in bf16

    grow = jax.lax.broadcasted_iota(jnp.int32, (TH, 1, 1), 0) + hblk * TH
    top_ok = (grow > 0).astype(BF16)        # dy=0 tap invalid only on image row 0
    bot_ok = (grow < H - 1).astype(BF16)    # dy=2 tap invalid only on image row H-1
    zcol = jnp.zeros((TH, 1, Cb), BF16)

    taps = []
    for dy in range(3):
        rows = a[dy:dy + TH]                                          # (TH, W, Cb)
        if dy == 0:
            rows = rows * top_ok
        elif dy == 2:
            rows = rows * bot_ok
        for dx in range(3):
            if dx == 0:
                tap = jnp.concatenate([zcol, rows[:, :W - 1, :]], axis=1)
            elif dx == 2:
                tap = jnp.concatenate([rows[:, 1:, :], zcol], axis=1)
            else:
                tap = rows
            taps.append(tap)
    big = jnp.concatenate(taps, axis=2).reshape(P, 9 * Cb)            # (P, 9*Cb) bf16
    h2 = jnp.dot(big, w2_ref[...], preferred_element_type=F32) + bb_ref[...]
    h2_ref[0] = h2.astype(h2_ref.dtype)                               # bf16 store
    st_ref[...] = jnp.concatenate(
        [jnp.sum(h2, axis=0, keepdims=True),
         jnp.sum(h2 * h2, axis=0, keepdims=True)], axis=0)[None, None]


def _stage3_proj_kernel(h2_ref, x_ref, s_ref, b_ref, wcat_ref, bias_ref, o_ref):
    """BN3 -> ReLU -> 1x1 conv fused with the projection shortcut:
    one matmul of [relu(bn3(h2)), x] against the stacked (Cb+Cin, Cout) weight."""
    a = jnp.maximum(h2_ref[0].astype(F32) * s_ref[...] + b_ref[...], 0.0)
    cat = jnp.concatenate([a.astype(BF16), x_ref[0].astype(BF16)], axis=1)
    o_ref[0] = (jnp.dot(cat, wcat_ref[...], preferred_element_type=F32)
                + bias_ref[...]).astype(o_ref.dtype)


def _stage3_id_kernel(h2_ref, x_ref, s_ref, b_ref, w3_ref, bb3_ref, o_ref):
    """BN3 -> ReLU -> 1x1 conv plus identity shortcut (no eye() matmul)."""
    a = jnp.maximum(h2_ref[0].astype(F32) * s_ref[...] + b_ref[...], 0.0)
    res = jnp.dot(a.astype(BF16), w3_ref[...], preferred_element_type=F32) + bb3_ref[...]
    o_ref[0] = (res + x_ref[0]).astype(o_ref.dtype)


# --------------------------------- wrapper ---------------------------------

def _pick_tile(total, max_tile, grain):
    """Largest divisor of `total` that is <= max_tile and a multiple of `grain`."""
    if total <= max_tile:
        return total
    best = None
    t = grain
    while t <= max_tile:
        if total % t == 0:
            best = t
        t += grain
    return best if best is not None else total


def _vmem_capacity_bytes():
    cap = 64 * 1024 * 1024                       # conservative default (v7x physical)
    try:
        cap = int(getattr(pltpu.get_tpu_info(), "vmem_capacity_bytes", cap))
    except Exception:
        pass
    return cap


def _cparams(grid, streamed_bytes, resident_bytes):
    """Streamed blocks are double-buffered by the pipeline; residents/temps are single."""
    need = 2 * int(streamed_bytes) + int(resident_bytes)
    limit = max(32 * 1024 * 1024, int(1.25 * need))
    limit = min(limit, int(0.75 * _vmem_capacity_bytes()))   # ~96 MiB v5e/v6e, ~48 MiB v7x
    limit = max(limit, 16 * 1024 * 1024)
    return pltpu.CompilerParams(dimension_semantics=("parallel",) * len(grid),
                                vmem_limit_bytes=limit)


def _fold_bn(stats, count, gamma, beta):
    """Reduce per-tile (sum, sumsq) partials -> folded BN scale/shift (training-mode BN)."""
    c = stats.shape[-1]
    flat = stats.reshape(-1, 2, c)
    mean = flat[:, 0, :].sum(axis=0) / count
    var = flat[:, 1, :].sum(axis=0) / count - mean * mean            # biased variance
    scale = gamma.astype(F32) * jax.lax.rsqrt(var + EPS)
    shift = beta.astype(F32) - mean * scale
    return scale.reshape(1, c), shift.reshape(1, c)


def preact_residual_pallas(x_nchw, params, has_shortcut, *, stride=1,
                           max_pixel_tile=2048, max_row_tile=32):
    assert stride == 1, "PreactResidual only adds consistently for stride=1"
    N, Cin, H, W = x_nchw.shape
    P = H * W
    assert W % 8 == 0, "stage-2 halo tiling requires image width to be a multiple of 8"
    (g1, be1, w1, bb1, g2, be2, w2, bb2, g3, be3, w3, bb3, ws, bs) = params
    Cb = w1.shape[0]
    Cout = w3.shape[0]

    x_c = x_nchw.reshape(N, Cin, P).astype(F32)                     # NCHW, flat pixels

    # PyTorch OIHW weights -> matmul-friendly layouts, pre-cast to bf16.
    w1_m = jnp.transpose(w1[:, :, 0, 0], (1, 0)).astype(BF16)                  # (Cin, Cb)
    w2_m = jnp.transpose(w2, (2, 3, 1, 0)).reshape(9 * Cb, Cb).astype(BF16)    # (9*Cb, Cb)
    w3_m = jnp.transpose(w3[:, :, 0, 0], (1, 0)).astype(BF16)                  # (Cb, Cout)
    row = lambda v: v.reshape(1, -1).astype(F32)

    TP0 = _pick_tile(P, max_pixel_tile, 128)    # pass-0 tile (last dim of the NCHW block)
    TP = _pick_tile(P, max_pixel_tile, 8)       # 1x1-stage pixel tile
    TH = _pick_tile(H, max_row_tile, 1)         # 3x3-stage row tile
    nP0, nPT, nH = P // TP0, P // TP, H // TH
    count = float(N * P)

    # ---- pass 0: NCHW->NHWC transpose fused with BN1 batch statistics ---------------------
    x_nhwc, st0 = pl.pallas_call(
        _trans_stats_kernel,
        grid=(N, nP0),
        in_specs=[pl.BlockSpec((1, Cin, TP0), lambda n, p: (n, 0, p))],
        out_specs=[pl.BlockSpec((1, TP0, Cin), lambda n, p: (n, p, 0)),
                   pl.BlockSpec((1, 1, 2, Cin), lambda n, p: (n, p, 0, 0))],
        out_shape=(jax.ShapeDtypeStruct((N, P, Cin), F32),
                   jax.ShapeDtypeStruct((N, nP0, 2, Cin), F32)),
        compiler_params=_cparams((N, nP0), 8 * TP0 * Cin + 8 * Cin, 8 * TP0 * Cin),
    )(x_c)
    s1, b1 = _fold_bn(st0, count, g1, be1)

    # ---- stage 1: BN1 -> ReLU -> 1x1 conv (h1 bf16; f32 stats for BN2) ---------------------
    h1, st1 = pl.pallas_call(
        _stage1_kernel,
        grid=(N, nPT),
        in_specs=[
            pl.BlockSpec((1, TP, Cin), lambda n, p: (n, p, 0)),
            pl.BlockSpec((1, Cin), lambda n, p: (0, 0)),
            pl.BlockSpec((1, Cin), lambda n, p: (0, 0)),
            pl.BlockSpec((Cin, Cb), lambda n, p: (0, 0)),
            pl.BlockSpec((1, Cb), lambda n, p: (0, 0)),
        ],
        out_specs=[
            pl.BlockSpec((1, TP, Cb), lambda n, p: (n, p, 0)),
            pl.BlockSpec((1, 1, 2, Cb), lambda n, p: (n, p, 0, 0)),
        ],
        out_shape=(jax.ShapeDtypeStruct((N, P, Cb), BF16),
                   jax.ShapeDtypeStruct((N, nPT, 2, Cb), F32)),
        compiler_params=_cparams(
            (N, nPT), 4 * TP * Cin + 2 * TP * Cb + 8 * Cb,
            2 * Cin * Cb + 6 * TP * Cin + 4 * TP * Cb),
    )(x_nhwc, s1, b1, w1_m, row(bb1))
    s2, b2 = _fold_bn(st1, count, g2, be2)

    # ---- stage 2: BN2 -> ReLU -> 3x3 conv pad=1, halo row-blocks, single folded matmul -----
    PW = (TH + 2) * W
    h2, st2 = pl.pallas_call(
        functools.partial(_stage2_kernel, H=H, W=W, TH=TH),
        grid=(N, nH),
        in_specs=[
            pl.BlockSpec((1, TH * W, Cb), lambda n, h: (n, h, 0)),                            # main rows
            pl.BlockSpec((1, W, Cb), lambda n, h: (n, jnp.maximum(h * TH - 1, 0), 0)),        # top halo row
            pl.BlockSpec((1, W, Cb), lambda n, h: (n, jnp.minimum((h + 1) * TH, H - 1), 0)),  # bottom halo row
            pl.BlockSpec((1, Cb), lambda n, h: (0, 0)),
            pl.BlockSpec((1, Cb), lambda n, h: (0, 0)),
            pl.BlockSpec((9 * Cb, Cb), lambda n, h: (0, 0)),
            pl.BlockSpec((1, Cb), lambda n, h: (0, 0)),
        ],
        out_specs=[
            pl.BlockSpec((1, TH * W, Cb), lambda n, h: (n, h, 0)),
            pl.BlockSpec((1, 1, 2, Cb), lambda n, h: (n, h, 0, 0)),
        ],
        out_shape=(jax.ShapeDtypeStruct((N, P, Cb), BF16),
                   jax.ShapeDtypeStruct((N, nH, 2, Cb), F32)),
        compiler_params=_cparams(
            (N, nH), 4 * TH * W * Cb + 4 * W * Cb + 8 * Cb,
            2 * 9 * Cb * Cb + 6 * PW * Cb + 4 * TH * W * 9 * Cb + 4 * TH * W * Cb),
    )(h1, h1, h1, s2, b2, w2_m, row(bb2))
    s3, b3 = _fold_bn(st2, count, g3, be3)

    # ---- stage 3: BN3 -> ReLU -> 1x1 conv + shortcut (projection fused into one matmul) ----
    data_specs = [
        pl.BlockSpec((1, TP, Cb), lambda n, p: (n, p, 0)),
        pl.BlockSpec((1, TP, Cin), lambda n, p: (n, p, 0)),
        pl.BlockSpec((1, Cb), lambda n, p: (0, 0)),
        pl.BlockSpec((1, Cb), lambda n, p: (0, 0)),
    ]
    if has_shortcut:
        ws_m = jnp.transpose(ws[:, :, 0, 0], (1, 0)).astype(BF16)              # (Cin, Cout)
        wcat = jnp.concatenate([w3_m, ws_m], axis=0)                           # (Cb+Cin, Cout)
        kern = _stage3_proj_kernel
        wargs = (wcat, row(bb3 + bs))
        wspecs = [pl.BlockSpec((Cb + Cin, Cout), lambda n, p: (0, 0)),
                  pl.BlockSpec((1, Cout), lambda n, p: (0, 0))]
        kwidth = Cb + Cin
    else:
        assert Cin == Cout, "identity shortcut requires in_dim == out_dim"
        kern = _stage3_id_kernel
        wargs = (w3_m, row(bb3))
        wspecs = [pl.BlockSpec((Cb, Cout), lambda n, p: (0, 0)),
                  pl.BlockSpec((1, Cout), lambda n, p: (0, 0))]
        kwidth = Cb

    out = pl.pallas_call(
        kern,
        grid=(N, nPT),
        in_specs=data_specs + wspecs,
        out_specs=pl.BlockSpec((1, TP, Cout), lambda n, p: (n, p, 0)),
        out_shape=jax.ShapeDtypeStruct((N, P, Cout), x_nchw.dtype),
        compiler_params=_cparams(
            (N, nPT), 2 * TP * Cb + 4 * TP * Cin + 4 * TP * Cout,
            2 * kwidth * Cout + 2 * TP * kwidth + 8 * TP * Cout),
    )(h2, x_nhwc, s3, b3, *wargs)

    return jnp.transpose(out.reshape(N, H, W, Cout), (0, 3, 1, 2))            # back to NCHW


# ----------------------- pure-JAX reference (NCHW, matches PyTorch) -----------------------
def preact_residual_ref(x, params, has_shortcut):
    (g1, be1, w1, bb1, g2, be2, w2, bb2, g3, be3, w3, bb3, ws, bs) = params

    def bn(h, g, b):
        mean = h.mean(axis=(0, 2, 3), keepdims=True)
        var = ((h - mean) ** 2).mean(axis=(0, 2, 3), keepdims=True)
        return (h - mean) * jax.lax.rsqrt(var + EPS) * g.reshape(1, -1, 1, 1) + b.reshape(1, -1, 1, 1)

    def conv(h, w, b, pad):
        y = jax.lax.conv_general_dilated(
            h, w, (1, 1), [(pad, pad), (pad, pad)],
            dimension_numbers=("NCHW", "OIHW", "NCHW"))
        return y + b.reshape(1, -1, 1, 1)

    h = jnp.maximum(bn(x, g1, be1), 0.0)
    h = conv(h, w1, bb1, 0)
    h = jnp.maximum(bn(h, g2, be2), 0.0)
    h = conv(h, w2, bb2, 1)
    h = jnp.maximum(bn(h, g3, be3), 0.0)
    h = conv(h, w3, bb3, 0)
    sc = conv(x, ws, bs, 0) if has_shortcut else x
    return h + sc


def init_params(key, in_dim, out_dim):
    bneck = in_dim // 4
    ks = jax.random.split(key, 14)
    n = lambda k, shape, s=0.1: s * jax.random.normal(k, shape, jnp.float32)
    g1 = 1.0 + n(ks[0], (in_dim,));   be1 = n(ks[1], (in_dim,))
    w1 = n(ks[2], (bneck, in_dim, 1, 1));   bb1 = n(ks[3], (bneck,))
    g2 = 1.0 + n(ks[4], (bneck,));    be2 = n(ks[5], (bneck,))
    w2 = n(ks[6], (bneck, bneck, 3, 3));    bb2 = n(ks[7], (bneck,))
    g3 = 1.0 + n(ks[8], (bneck,));    be3 = n(ks[9], (bneck,))
    w3 = n(ks[10], (out_dim, bneck, 1, 1)); bb3 = n(ks[11], (out_dim,))
    has_shortcut = in_dim != out_dim  # stride==1 assumed
    if has_shortcut:
        ws = n(ks[12], (out_dim, in_dim, 1, 1)); bs = n(ks[13], (out_dim,))
    else:
        ws, bs = None, None
    return (g1, be1, w1, bb1, g2, be2, w2, bb2, g3, be3, w3, bb3, ws, bs), has_shortcut


if __name__ == "__main__":
    key = jax.random.PRNGKey(0)
    N, H, W = 2, 16, 16

    # Exercise the projection- and identity-shortcut paths, multi-tile pixel grids,
    # and multi-block halo row tiling (TH=8 -> two row blocks per image).
    for in_dim, out_dim in [(64, 128), (64, 64)]:
        key, kx, kp = jax.random.split(key, 3)
        x = jax.random.normal(kx, (N, in_dim, H, W), jnp.float32)
        params, has_shortcut = init_params(kp, in_dim, out_dim)

        out = jax.block_until_ready(
            preact_residual_pallas(x, params, has_shortcut,
                                   max_pixel_tile=128, max_row_tile=8))
        ref = jax.block_until_ready(preact_residual_ref(x, params, has_shortcut))

        assert out.shape == (N, out_dim, H, W), out.shape
        # bf16 MXU inputs + bf16 h1/h2 intermediates vs an all-f32 reference: agreement is at
        # the ~1e-2 level here; real bugs (wrong tap/halo/mask/stats) are O(0.1+) and would
        # still trip this check.
        max_err = float(jnp.max(jnp.abs(out - ref)))
        assert jnp.allclose(out, ref, atol=5e-2, rtol=5e-2), max_err
    print("KERNEL_OK")
</pallas_src>

<mosaic_0001>
module attributes {stable_mosaic.version = 11 : i64} {
  func.func @_trans_stats_kernel(%arg0: i32, %arg1: i32, %arg2: memref<1x64x128xf32, #tpu.memory_space<vmem>>, %arg3: memref<1x128x64xf32, #tpu.memory_space<vmem>>, %arg4: memref<1x1x2x64xf32, #tpu.memory_space<vmem>>) attributes {dimension_semantics = [#tpu.dimension_semantics<parallel>, #tpu.dimension_semantics<parallel>], iteration_bounds = array<i64: 2, 2>, scalar_prefetch = 0 : i64, scratch_operands = 0 : i64, tpu.core_type = #tpu.core_type<tc>, window_params = [{transform_indices = @transform_0, window_bounds = array<i64: 1, 64, 128>}, {transform_indices = @transform_1, window_bounds = array<i64: 1, 128, 64>}, {transform_indices = @transform_2, window_bounds = array<i64: 1, 1, 2, 64>}]} {
    %c0 = arith.constant 0 : index
    %c0_0 = arith.constant 0 : index
    %c0_1 = arith.constant 0 : index
    %0 = vector.load %arg2[%c0, %c0_0, %c0_1] : memref<1x64x128xf32, #tpu.memory_space<vmem>>, vector<1x64x128xf32>
    %1 = vector.shape_cast %0 : vector<1x64x128xf32> to vector<64x128xf32>
    %2 = tpu.transpose %1, [1, 0] : vector<64x128xf32> -> vector<128x64xf32>
    %c0_2 = arith.constant 0 : index
    %c0_3 = arith.constant 0 : index
    %c0_4 = arith.constant 0 : index
    %3 = vector.load %arg3[%c0_2, %c0_3, %c0_4] : memref<1x128x64xf32, #tpu.memory_space<vmem>>, vector<1x128x64xf32>
    %4 = vector.shape_cast %3 : vector<1x128x64xf32> to vector<128x64xf32>
    %5 = vector.shape_cast %2 : vector<128x64xf32> to vector<1x128x64xf32>
    tpu.vector_store %arg3[%c0_2, %c0_3, %c0_4], %5 {strides = array<i32>} : memref<1x128x64xf32, #tpu.memory_space<vmem>>, vector<1x128x64xf32>,
    %cst = arith.constant dense<0.000000e+00> : vector<64xf32>
    %6 = vector.multi_reduction <add>, %2, %cst [0] : vector<128x64xf32> to vector<64xf32>
    %7 = vector.shape_cast %6 : vector<64xf32> to vector<1x64xf32>
    %8 = arith.mulf %2, %2 : vector<128x64xf32>
    %cst_5 = arith.constant dense<0.000000e+00> : vector<64xf32>
    %9 = vector.multi_reduction <add>, %8, %cst_5 [0] : vector<128x64xf32> to vector<64xf32>
    %10 = vector.shape_cast %9 : vector<64xf32> to vector<1x64xf32>
    %11 = tpu.concatenate %7, %10 in 0 : vector<1x64xf32>, vector<1x64xf32> -> vector<2x64xf32>
    %12 = vector.shape_cast %11 : vector<2x64xf32> to vector<1x1x2x64xf32>
    %c0_6 = arith.constant 0 : index
    %c0_7 = arith.constant 0 : index
    %c0_8 = arith.constant 0 : index
    %c0_9 = arith.constant 0 : index
    %13 = vector.load %arg4[%c0_6, %c0_7, %c0_8, %c0_9] : memref<1x1x2x64xf32, #tpu.memory_space<vmem>>, vector<1x1x2x64xf32>
    tpu.vector_store %arg4[%c0_6, %c0_7, %c0_8, %c0_9], %12 {strides = array<i32>} : memref<1x1x2x64xf32, #tpu.memory_space<vmem>>, vector<1x1x2x64xf32>,
    return
  }
  func.func @transform_0(%arg0: i32, %arg1: i32) -> (i32, i32, i32) {
    %c0_i32 = arith.constant 0 : i32
    %c0_i32_0 = arith.constant 0 : i32
    return %arg0, %c0_i32, %arg1 : i32, i32, i32
  }
  func.func @transform_1(%arg0: i32, %arg1: i32) -> (i32, i32, i32) {
    %c0_i32 = arith.constant 0 : i32
    %c0_i32_0 = arith.constant 0 : i32
    return %arg0, %arg1, %c0_i32 : i32, i32, i32
  }
  func.func @transform_2(%arg0: i32, %arg1: i32) -> (i32, i32, i32, i32) {
    %c0_i32 = arith.constant 0 : i32
    %c0_i32_0 = arith.constant 0 : i32
    %c0_i32_1 = arith.constant 0 : i32
    return %arg0, %arg1, %c0_i32, %c0_i32_0 : i32, i32, i32, i32
  }
}

</mosaic_0001>

<llo_original>
// kernel: tpu_custom_call.1
$region0: #{tpu_custom_call.1}
  #allocation0 [shape = 'u32[]', space=smem, size = 0x4, offset = 0x4, fixed_abs, tag = 'smem constant byte address 0x4 - core index']
  #allocation1 [shape = 'u32[72,128]{1,0:T(1,128)}', space=vmem, size = 0x9000, scoped, tag = 'internal scratch']
  %s0 = inlined_call_operand.hbm [shape: f32[2,64,256], index: 0, kind: input, shape index: {}]
  %s1 = inlined_call_operand.vmem [shape: f32[2,256,64], index: 1, kind: output, shape index: {0}]
  %s2 = inlined_call_operand.hbm [shape: f32[2,2,2,64], index: 2, kind: output, shape index: {1}]
  %3 = xla_tuple %s1, %s2
  %s4 = sld [smem:[#allocation0]]
  $region49: #{tpu_custom_call.1} parent=0
    _
  %s6 = ssub.s32 1, %s4
  %s7 = scalar_select 0, %s6, %s4
  $region1: #{tpu_custom_call.1} parent=0
    #allocation2 [shape = 'u8[65536]{0}', space=vmem, size = 0x10000, scoped, tag = 'input window, operand 0']
    #allocation3 [shape = 's32[2]{0}', space=sflag, size = 0x8, scoped, tag = 'scoped memory for tpu_custom_call.1']
    #allocation4 [shape = 's32[2]{0}', space=sflag, size = 0x8, scoped, tag = 'scoped memory for tpu_custom_call.1']
    #allocation5 [shape = 'u8[2048]{0}', space=vmem, size = 0x800, scoped, tag = 'output window, operand 1']
    %8 = vsyncpa [#allocation3], 0
    %s9 = scalar_lea.sflag [#allocation3], 1
    %10 = vsyncpa %s9, 0
    %11 = vsyncpa [#allocation4], 0
    %s12 = scalar_lea.sflag [#allocation4], 1
    %13 = vsyncpa %s12, 0
    loop: start=0, step=1, limit=6
    $region2: #{tpu_custom_call.1} parent=1 // loop_pre_header
      _
    $region3: #{tpu_custom_call.1} parent=1 // loop_header
      %s15 = sphi 0, %s19
      %p16 = scmp.ge.s32.totalorder %s15, 6
      %s22 = sphi 0, %s34
      %s23 = sphi 0, %s30
      %s24 = sphi 0, %s22
      %s25 = sphi 0, %s23
      %s26 = sphi 0, %s24
      %s27 = sphi 0, %s25
      %s39 = sphi 0, %s41
      %s42 = sphi 0, %s39
      %s43 = sphi 0, %s42
      %s59 = sphi 0, %s43
      %s67 = sphi 0, %s69
      %s70 = sphi 0, %s67
      %s71 = sphi 0, %s70
      %s87 = sphi 0, %s71
      %s95 = sphi 0, %s97
      %s98 = sphi 0, %s95
      %s99 = sphi 0, %s98
      %s115 = sphi 0, %s99
    $region4: #{tpu_custom_call.1} parent=1 // loop_header_branch
      %18 = sbr.rel (%p16) target = $region8
    $region5: #{tpu_custom_call.1} parent=1 // loop_body
      %s20 = ssub.s32 %s15, 1
      %s21 = ssub.s32 %s15, 2
      %s28 = sadd.s32 1, %s23
      %p29 = scmp.ge.s32.totalorder %s28, 2
      %s30 = scalar_select %p29, 0, %s28
      %s31 = sadd.s32 1, %s22
      %s32 = scalar_select %p29, %s31, %s22
      %p33 = scmp.ge.s32.totalorder %s32, 2
      %s34 = scalar_select %p33, 0, %s32
      %s35 = ssub.s32 %s22, %s34
      %s36 = ssub.s32 %s23, %s30
      %s37 = sor.u32 %s35, %s36
      %p38 = scmp.eq.s32.totalorder %s37, 0
      %s40 = sadd.s32 %s39, 1
      %s41 = scalar_select %p38, %s39, %s40
      %p44 = pneg %p38
      %p45 = scmp.eq.s32.totalorder %s15, 3
      %p46 = por %p44, %p45
      %p47 = scmp.ne.s32.totalorder %s39, %s42
      %p48 = scmp.eq.s32.totalorder %s15, 0
      %p49 = por %p47, %p48
      %p50 = scmp.ne.s32.totalorder %s39, %s42
      %p51 = scmp.eq.s32.totalorder %s20, 3
      %p52 = por %p50, %p51
      %p53 = scmp.ne.s32.totalorder %s42, %s43
      %p54 = scmp.eq.s32.totalorder %s20, 0
      %p55 = por %p53, %p54
      %p56 = scmp.ne.s32.totalorder %s42, %s43
      %p57 = scmp.eq.s32.totalorder %s21, 3
      %p58 = por %p56, %p57
      %p60 = scmp.ne.s32.totalorder %s43, %s59
      %p61 = scmp.eq.s32.totalorder %s21, 0
      %p62 = por %p60, %p61
      %s63 = ssub.s32 %s22, %s34
      %s64 = ssub.s32 %s23, %s30
      %s65 = sor.u32 %s63, %s64
      %p66 = scmp.eq.s32.totalorder %s65, 0
      %s68 = sadd.s32 %s67, 1
      %s69 = scalar_select %p66, %s67, %s68
      %p72 = pneg %p66
      %p73 = scmp.eq.s32.totalorder %s15, 3
      %p74 = por %p72, %p73
      %p75 = scmp.ne.s32.totalorder %s67, %s70
      %p76 = scmp.eq.s32.totalorder %s15, 0
      %p77 = por %p75, %p76
      %p78 = scmp.ne.s32.totalorder %s67, %s70
      %p79 = scmp.eq.s32.totalorder %s20, 3
      %p80 = por %p78, %p79
      %p81 = scmp.ne.s32.totalorder %s70, %s71
      %p82 = scmp.eq.s32.totalorder %s20, 0
      %p83 = por %p81, %p82
      %p84 = scmp.ne.s32.totalorder %s70, %s71
      %p85 = scmp.eq.s32.totalorder %s21, 3
      %p86 = por %p84, %p85
      %p88 = scmp.ne.s32.totalorder %s71, %s87
      %p89 = scmp.eq.s32.totalorder %s21, 0
      %p90 = por %p88, %p89
      %s91 = ssub.s32 %s22, %s34
      %s92 = ssub.s32 %s23, %s30
      %s93 = sor.u32 %s91, %s92
      %p94 = scmp.eq.s32.totalorder %s93, 0
      %s96 = sadd.s32 %s95, 1
      %s97 = scalar_select %p94, %s95, %s96
      %p100 = pneg %p94
      %p101 = scmp.eq.s32.totalorder %s15, 3
      %p102 = por %p100, %p101
      %p103 = scmp.ne.s32.totalorder %s95, %s98
      %p104 = scmp.eq.s32.totalorder %s15, 0
      %p105 = por %p103, %p104
      %p106 = scmp.ne.s32.totalorder %s95, %s98
      %p107 = scmp.eq.s32.totalorder %s20, 3
      %p108 = por %p106, %p107
      %p109 = scmp.ne.s32.totalorder %s98, %s99
      %p110 = scmp.eq.s32.totalorder %s20, 0
      %p111 = por %p109, %p110
      %p112 = scmp.ne.s32.totalorder %s98, %s99
      %p113 = scmp.eq.s32.totalorder %s21, 3
      %p114 = por %p112, %p113
      %p116 = scmp.ne.s32.totalorder %s99, %s115
      %p117 = scmp.eq.s32.totalorder %s21, 0
      %p118 = por %p116, %p117
      %p119 = scmp.le.s32.totalorder 1, %s15
      %p120 = scmp.lt.s32.totalorder %s15, 5
      %p121 = pnand %p119, %p120
      %p122 = pneg %p121
      // Predicated region
      $region9: #{tpu_custom_call.1} parent=5 // pred_check
        _
      $region10: #{tpu_custom_call.1} parent=5 // pred_check_branch
        %124 = sbr.rel (%p121) target = $region12
      $region11: #{tpu_custom_call.1} parent=5 // pred_region
        %s125 = ssub.s32 %s15, 1
      $region12: #{tpu_custom_call.1} parent=5 // pred_fallthru
        _
      %p126 = scmp.lt.s32.totalorder %s15, 4
      // Predicated region
      $region13: #{tpu_custom_call.1} parent=5 // pred_check
        %p127 = pneg %p126
      $region14: #{tpu_custom_call.1} parent=5 // pred_check_branch
        %129 = sbr.rel (%p127) target = $region16
      $region15: #{tpu_custom_call.1} parent=5 // pred_region
        // Predicated region
        $region17: #{tpu_custom_call.1} parent=15 // pred_check
          %p130 = pneg %p49
        $region18: #{tpu_custom_call.1} parent=15 // pred_check_branch
          %132 = sbr.rel (%p130) target = $region20
        $region19: #{tpu_custom_call.1} parent=15 // pred_region
          %s133 = sand.u32 %s39, 1
          %s134 = scalar_lea.sflag [#allocation3], %s133
          %s135 = sand.u32 %s39, 1
          %s136 = smul.addr %s135, 64
          %s137 = scalar_lea.vmem [#allocation2], %s136
          %139 = vsyncadd %s134, 0
          %s140 = smul.addr %s22, 16
          %s141 = sadd.s32 %s23, %s140
          %s142 = smul.addr %s141, 8
          %s143 = scalar_lea.hbm %s0, %s142
          %s144 = sshll.u32 %s143, 4
          %s145 = int_to_ptr.hbm [resolvable:$true] %s144
          %s146 = sshll.u32 %s137, 4
          %s147 = int_to_ptr.vmem [resolvable:$true] %s146
          %152 = dma.hbm_to_vmem [thread:$0]  %s145, 1024, %s147, %s134, 256, 128, 8
        $region20: #{tpu_custom_call.1} parent=15 // pred_fallthru
          _
      $region16: #{tpu_custom_call.1} parent=5 // pred_fallthru
        _
      %p153 = scmp.le.s32.totalorder 1, %s15
      %p154 = scmp.lt.s32.totalorder %s15, 5
      %p155 = pnand %p153, %p154
      %p156 = pneg %p155
      // Predicated region
      $region21: #{tpu_custom_call.1} parent=5 // pred_check
        _
      $region22: #{tpu_custom_call.1} parent=5 // pred_check_branch
        %158 = sbr.rel (%p155) target = $region24
      $region23: #{tpu_custom_call.1} parent=5 // pred_region
        %s159 = ssub.s32 %s15, 1
        %s160 = sand.u32 %s42, 1
        %s161 = scalar_lea.sflag [#allocation3], %s160
        %s162 = sand.u32 %s42, 1
        %s163 = smul.addr %s162, 64
        %s164 = scalar_lea.vmem [#allocation2], %s163
        // Predicated region
        $region25: #{tpu_custom_call.1} parent=23 // pred_check
          %p165 = pneg %p55
        $region26: #{tpu_custom_call.1} parent=23 // pred_check_branch
          %167 = sbr.rel (%p165) target = $region28
        $region27: #{tpu_custom_call.1} parent=23 // pred_region
          %169 = dma.done %s161, 1024
        $region28: #{tpu_custom_call.1} parent=23 // pred_fallthru
          _
        %s170 = sand.u32 %s42, 1
        %s171 = scalar_lea.sflag [#allocation3], %s170
        %s172 = sand.u32 %s42, 1
        %s173 = smul.addr %s172, 64
        %s174 = scalar_lea.vmem [#allocation2], %s173
        %p175 = pneg %p55
        %p176 = pneg %p52
        %p177 = pneg %p83
        %p178 = pneg %p80
        %s179 = smul.u32 16, %s25
        %p180 = scmp.lt.s32.totalorder %s24, 1
        %s181 = scalar_select %p180, %s24, 1
        %p182 = scmp.lt.s32.totalorder %s179, 31
        %s183 = scalar_select %p182, %s179, 31
        %s184 = smul.addr %s181, 32
        %s185 = sadd.s32 %s183, %s184
        %s186 = smul.addr %s185, 8
        %s187 = scalar_lea.vmem %s1, %s186
        %p188 = pneg %p111
        %p189 = pneg %p108
        %s190 = sand.u32 %s98, 1
        %s191 = scalar_lea.sflag [#allocation4], %s190
        %s192 = sand.u32 %s98, 1
        %s193 = smul.addr %s192, 2
        %s194 = scalar_lea.vmem [#allocation5], %s193
        %s195 = smul.u32 16, %s25
        %p196 = scmp.lt.s32.totalorder %s24, 1
        %s197 = scalar_select %p196, %s24, 1
        %p198 = scmp.lt.s32.totalorder %s195, 31
        %s199 = scalar_select %p198, %s195, 31
        %s200 = smul.addr %s197, 32
        %s201 = sadd.s32 %s199, %s200
        %s202 = smul.addr %s201, 8
        %s203 = scalar_lea.vmem %s1, %s202
        %s204 = smul.u32 16, %s25
        %v205 = vld [vmem:[%s164] sm:$0xff]
        %v206 = vld [vmem:[%s164 + $0x8] sm:$0xff]
        %v207 = vld [vmem:[%s164 + $0x10] sm:$0xff]
        %v208 = vld [vmem:[%s164 + $0x18] sm:$0xff]
        %v209 = vld [vmem:[%s164 + $0x20] sm:$0xff]
        %v210 = vld [vmem:[%s164 + $0x28] sm:$0xff]
        %v211 = vld [vmem:[%s164 + $0x30] sm:$0xff]
        %v212 = vld [vmem:[%s164 + $0x38] sm:$0xff]
        %213 = vxpose.xlu0.b32.start [1/16] %v205, 128
        %214 = vxpose.xlu0.b32.cont [2/16] %v206, 128
        %215 = vxpose.xlu0.b32.cont [3/16] %v207, 128
        %216 = vxpose.xlu0.b32.cont [4/16] %v208, 128
        %217 = vxpose.xlu0.b32.cont [5/16] %v209, 128
        %218 = vxpose.xlu0.b32.cont [6/16] %v210, 128
        %219 = vxpose.xlu0.b32.cont [7/16] %v211, 128
        %220 = vxpose.xlu0.b32.cont [8/16] %v212, 128
        %221 = vxpose.xlu0.b32.cont [9/16] 0.0, 128
        %222 = vxpose.xlu0.b32.cont [10/16] 0.0, 128
        %223 = vxpose.xlu0.b32.cont [11/16] 0.0, 128
        %224 = vxpose.xlu0.b32.cont [12/16] 0.0, 128
        %225 = vxpose.xlu0.b32.cont [13/16] 0.0, 128
        %226 = vxpose.xlu0.b32.cont [14/16] 0.0, 128
        %227 = vxpose.xlu0.b32.cont [15/16] 0.0, 128
        %228 = vxpose.xlu0.b32.end [16/16] 0.0, 128
        %v229 = vpop.trf.xlu0
        %v230 = vpop.trf.xlu0
        %v231 = vpop.trf.xlu0
        %v232 = vpop.trf.xlu0
        %v233 = vpop.trf.xlu0
        %v234 = vpop.trf.xlu0
        %v235 = vpop.trf.xlu0
        %v236 = vpop.trf.xlu0
        %v237 = vpop.trf.xlu0
        %v238 = vpop.trf.xlu0
        %v239 = vpop.trf.xlu0
        %v240 = vpop.trf.xlu0
        %v241 = vpop.trf.xlu0
        %v242 = vpop.trf.xlu0
        %v243 = vpop.trf.xlu0
        %v244 = vpop.trf.xlu0
        %vm245 = vcmask 523264
        %246 = vst.msk [vmem:[%s203] sm:$0xff] %vm245, %v229
        %247 = vst.msk [vmem:[%s203 + $0x8] sm:$0xff] %vm245, %v230
        %248 = vst.msk [vmem:[%s203 + $0x10] sm:$0xff] %vm245, %v231
        %249 = vst.msk [vmem:[%s203 + $0x18] sm:$0xff] %vm245, %v232
        %250 = vst.msk [vmem:[%s203 + $0x20] sm:$0xff] %vm245, %v233
        %251 = vst.msk [vmem:[%s203 + $0x28] sm:$0xff] %vm245, %v234
        %252 = vst.msk [vmem:[%s203 + $0x30] sm:$0xff] %vm245, %v235
        %253 = vst.msk [vmem:[%s203 + $0x38] sm:$0xff] %vm245, %v236
        %254 = vst.msk [vmem:[%s203 + $0x40] sm:$0xff] %vm245, %v237
        %255 = vst.msk [vmem:[%s203 + $0x48] sm:$0xff] %vm245, %v238
        %256 = vst.msk [vmem:[%s203 + $0x50] sm:$0xff] %vm245, %v239
        %257 = vst.msk [vmem:[%s203 + $0x58] sm:$0xff] %vm245, %v240
        %258 = vst.msk [vmem:[%s203 + $0x60] sm:$0xff] %vm245, %v241
        %259 = vst.msk [vmem:[%s203 + $0x68] sm:$0xff] %vm245, %v242
        %260 = vst.msk [vmem:[%s203 + $0x70] sm:$0xff] %vm245, %v243
        %261 = vst.msk [vmem:[%s203 + $0x78] sm:$0xff] %vm245, %v244
        %v262 = vsel %vm245, %v229, 0.0
        %v263 = vsel %vm245, %v230, 0.0
        %v264 = vadd.f32 %v262, %v263
        %v265 = vsel %vm245, %v231, 0.0
        %v266 = vadd.f32 %v264, %v265
        %v267 = vsel %vm245, %v232, 0.0
        %v268 = vadd.f32 %v266, %v267
        %v269 = vsel %vm245, %v233, 0.0
        %v270 = vadd.f32 %v268, %v269
        %v271 = vsel %vm245, %v234, 0.0
        %v272 = vadd.f32 %v270, %v271
        %v273 = vsel %vm245, %v235, 0.0
        %v274 = vadd.f32 %v272, %v273
        %v275 = vsel %vm245, %v236, 0.0
        %v276 = vadd.f32 %v274, %v275
        %v277 = vsel %vm245, %v237, 0.0
        %v278 = vadd.f32 %v276, %v277
        %v279 = vsel %vm245, %v238, 0.0
        %v280 = vadd.f32 %v278, %v279
        %v281 = vsel %vm245, %v239, 0.0
        %v282 = vadd.f32 %v280, %v281
        %v283 = vsel %vm245, %v240, 0.0
        %v284 = vadd.f32 %v282, %v283
        %v285 = vsel %vm245, %v241, 0.0
        %v286 = vadd.f32 %v284, %v285
        %v287 = vsel %vm245, %v242, 0.0
        %v288 = vadd.f32 %v286, %v287
        %v289 = vsel %vm245, %v243, 0.0
        %v290 = vadd.f32 %v288, %v289
        %v291 = vsel %vm245, %v244, 0.0
        %v292 = vadd.f32 %v290, %v291
        %v293 = vrot.slane %v292, 4
        %v294 = vadd.f32 %v292, %v293
        %v295 = vrot.slane %v294, 2
        %v296 = vadd.f32 %v294, %v295
        %v297 = vrot.slane %v296, 1
        %v298 = vadd.f32 %v296, %v297
        %v299 = vmul.f32 %v229, %v229
        %v300 = vmul.f32 %v230, %v230
        %v301 = vmul.f32 %v231, %v231
        %v302 = vmul.f32 %v232, %v232
        %v303 = vmul.f32 %v233, %v233
        %v304 = vmul.f32 %v234, %v234
        %v305 = vmul.f32 %v235, %v235
        %v306 = vmul.f32 %v236, %v236
        %v307 = vmul.f32 %v237, %v237
        %v308 = vmul.f32 %v238, %v238
        %v309 = vmul.f32 %v239, %v239
        %v310 = vmul.f32 %v240, %v240
        %v311 = vmul.f32 %v241, %v241
        %v312 = vmul.f32 %v242, %v242
        %v313 = vmul.f32 %v243, %v243
        %v314 = vmul.f32 %v244, %v244
        %v315 = vsel %vm245, %v299, 0.0
        %v316 = vsel %vm245, %v300, 0.0
        %v317 = vadd.f32 %v315, %v316
        %v318 = vsel %vm245, %v301, 0.0
        %v319 = vadd.f32 %v317, %v318
        %v320 = vsel %vm245, %v302, 0.0
        %v321 = vadd.f32 %v319, %v320
        %v322 = vsel %vm245, %v303, 0.0
        %v323 = vadd.f32 %v321, %v322
        %v324 = vsel %vm245, %v304, 0.0
        %v325 = vadd.f32 %v323, %v324
        %v326 = vsel %vm245, %v305, 0.0
        %v327 = vadd.f32 %v325, %v326
        %v328 = vsel %vm245, %v306, 0.0
        %v329 = vadd.f32 %v327, %v328
        %v330 = vsel %vm245, %v307, 0.0
        %v331 = vadd.f32 %v329, %v330
        %v332 = vsel %vm245, %v308, 0.0
        %v333 = vadd.f32 %v331, %v332
        %v334 = vsel %vm245, %v309, 0.0
        %v335 = vadd.f32 %v333, %v334
        %v336 = vsel %vm245, %v310, 0.0
        %v337 = vadd.f32 %v335, %v336
        %v338 = vsel %vm245, %v311, 0.0
        %v339 = vadd.f32 %v337, %v338
        %v340 = vsel %vm245, %v312, 0.0
        %v341 = vadd.f32 %v339, %v340
        %v342 = vsel %vm245, %v313, 0.0
        %v343 = vadd.f32 %v341, %v342
        %v344 = vsel %vm245, %v314, 0.0
        %v345 = vadd.f32 %v343, %v344
        %v346 = vrot.slane %v345, 4
        %v347 = vadd.f32 %v345, %v346
        %v348 = vrot.slane %v347, 2
        %v349 = vadd.f32 %v347, %v348
        %v350 = vrot.slane %v349, 1
        %v351 = vadd.f32 %v349, %v350
        %vm352 = vcmask 1040384
        %v353 = vsel %vm352, %v298, %v351
        %vm354 = vcmask 517120
        %355 = vst.msk [vmem:[%s194] sm:$0x3] %vm354, %v353
        %s356 = smul.u32 16, %s25
        %p357 = scmp.lt.s32.totalorder %s24, 1
        %s358 = scalar_select %p357, %s24, 1
        %p359 = scmp.lt.s32.totalorder %s356, 31
        %s360 = scalar_select %p359, %s356, 31
        %s361 = smul.addr %s358, 32
        %s362 = sadd.s32 %s360, %s361
        %s363 = smul.addr %s362, 8
        %s364 = scalar_lea.vmem %s1, %s363
        %s365 = sand.u32 %s98, 1
        %s366 = scalar_lea.sflag [#allocation4], %s365
        %s367 = sand.u32 %s98, 1
        %s368 = smul.addr %s367, 2
        %s369 = scalar_lea.vmem [#allocation5], %s368
        // Predicated region
        $region29: #{tpu_custom_call.1} parent=23 // pred_check
          %p370 = pneg %p80
        $region30: #{tpu_custom_call.1} parent=23 // pred_check_branch
          %372 = sbr.rel (%p370) target = $region32
        $region31: #{tpu_custom_call.1} parent=23 // pred_region
          %s373 = smul.u32 16, %s25
        $region32: #{tpu_custom_call.1} parent=23 // pred_fallthru
          _
        // Predicated region
        $region33: #{tpu_custom_call.1} parent=23 // pred_check
          %p374 = pneg %p108
        $region34: #{tpu_custom_call.1} parent=23 // pred_check_branch
          %376 = sbr.rel (%p374) target = $region36
        $region35: #{tpu_custom_call.1} parent=23 // pred_region
          %378 = vsyncadd %s366, 0
          %s379 = smul.addr %s24, 2
          %s380 = sadd.s32 %s25, %s379
          %s381 = smul.addr %s380, 2
          %s382 = scalar_lea.hbm %s2, %s381
          %s384 = sshll.u32 %s369, 4
          %s385 = int_to_ptr.vmem [resolvable:$true] %s384
          %s386 = sshll.u32 %s382, 4
          %s387 = int_to_ptr.hbm [resolvable:$true] %s386
          %389 = dma.vmem_to_hbm [thread:$0]  %s385, 32, %s387, %s366
        $region36: #{tpu_custom_call.1} parent=23 // pred_fallthru
          _
      $region24: #{tpu_custom_call.1} parent=5 // pred_fallthru
        _
      %p390 = scmp.le.s32.totalorder 2, %s15
      // Predicated region
      $region37: #{tpu_custom_call.1} parent=5 // pred_check
        %p391 = pneg %p390
      $region38: #{tpu_custom_call.1} parent=5 // pred_check_branch
        %393 = sbr.rel (%p391) target = $region40
      $region39: #{tpu_custom_call.1} parent=5 // pred_region
        %s394 = ssub.s32 %s15, 2
        // Predicated region
        $region41: #{tpu_custom_call.1} parent=39 // pred_check
          %p395 = pneg %p86
        $region42: #{tpu_custom_call.1} parent=39 // pred_check_branch
          %397 = sbr.rel (%p395) target = $region44
        $region43: #{tpu_custom_call.1} parent=39 // pred_region
          %s398 = smul.u32 16, %s27
          %p399 = scmp.lt.s32.totalorder %s26, 1
          %s400 = scalar_select %p399, %s26, 1
          %p401 = scmp.lt.s32.totalorder %s398, 31
          %s402 = scalar_select %p401, %s398, 31
          %s403 = smul.addr %s400, 32
          %s404 = sadd.s32 %s402, %s403
          %s405 = smul.addr %s404, 8
          %s406 = scalar_lea.vmem %s1, %s405
        $region44: #{tpu_custom_call.1} parent=39 // pred_fallthru
          _
        // Predicated region
        $region45: #{tpu_custom_call.1} parent=39 // pred_check
          %p407 = pneg %p114
        $region46: #{tpu_custom_call.1} parent=39 // pred_check_branch
          %409 = sbr.rel (%p407) target = $region48
        $region47: #{tpu_custom_call.1} parent=39 // pred_region
          %s410 = sand.u32 %s99, 1
          %s411 = scalar_lea.sflag [#allocation4], %s410
          %s412 = sand.u32 %s99, 1
          %s413 = smul.addr %s412, 2
          %s414 = scalar_lea.vmem [#allocation5], %s413
          %416 = dma.done %s411, 32
        $region48: #{tpu_custom_call.1} parent=39 // pred_fallthru
          _
      $region40: #{tpu_custom_call.1} parent=5 // pred_fallthru
        _
    $region6: #{tpu_custom_call.1} parent=1 // loop_footer
      %s19 = sadd.s32 1, %s15
    $region7: #{tpu_custom_call.1} parent=1 // loop_footer_branch
      %14 = sbr.rel target = $region3
    $region8: #{tpu_custom_call.1} parent=1 // loop_exit
      _
    %417 = vsyncpa [#allocation3], 1
    %s418 = scalar_lea.sflag [#allocation3], 1
    %419 = vsyncpa %s418, 1
    %420 = vsyncpa [#allocation4], 1
    %s421 = scalar_lea.sflag [#allocation4], 1
    %422 = vsyncpa %s421, 1

</llo_original>
